<compile_context>
chip_gen: v6e
topology: v6e:2x2x1
jax: 0.10.0
libtpu: 0.0.40
codegen_flags: <defaults>
</compile_context>

<pallas_src>
import functools

import jax
import jax.numpy as jnp
from jax.experimental import pallas as pl
from jax.experimental.pallas import tpu as pltpu


def _round_up(x, m):
    return ((x + m - 1) // m) * m


# ----------------------------------------------------------------------------
# Kernel 1: gathered path.  Streams the small pre-gathered 2-D slab
# [rows_padded, n_planes*B*C] in (TR, L) row blocks and accumulates the
# squared magnitude difference in a VMEM scratch; one reduction at the end.
# Zero-padded rows contribute exactly 0, so no masking is needed.
# ----------------------------------------------------------------------------
def _gather_mse_kernel(x_ref, o_ref, acc_ref, *, bc, n_planes):
    step = pl.program_id(1)

    @pl.when(step == 0)
    def _():
        acc_ref[...] = jnp.zeros_like(acc_ref)

    x = x_ref[...]                               # (TR, n_planes*bc)
    if n_planes == 4:                            # planes = [rp | ip | rt | it]
        rp = x[:, 0 * bc:1 * bc]
        ip = x[:, 1 * bc:2 * bc]
        rt = x[:, 2 * bc:3 * bc]
        it = x[:, 3 * bc:4 * bc]
        # TODO(synk): if ever EUP-bound, switch to the single-sqrt identity
        # (rp^2+ip^2)+(rt^2+it^2)-2*sqrt((rp^2+ip^2)*(rt^2+it^2)).
        mag_p = jnp.sqrt(rp * rp + ip * ip)
        mag_t = jnp.sqrt(rt * rt + it * it)
    else:                                        # planes = [pred | true]
        mag_p = jnp.abs(x[:, 0:bc])
        mag_t = jnp.abs(x[:, bc:2 * bc])

    acc_ref[...] += (mag_p - mag_t) ** 2

    @pl.when(step == pl.num_programs(1) - 1)
    def _():
        total = jnp.sum(acc_ref[...])
        o_ref[...] = jnp.broadcast_to(total, o_ref.shape)


def _masked_mse_gather(y_pred, y_true, idx, *, is_cplx, B, C, inv_count):
    n = int(idx.shape[0])
    n_planes = 4 if is_cplx else 2
    bc = B * C
    L = n_planes * bc

    # Gather ONLY the selected rows (sorted ascending for HBM locality).
    # All wrapper traffic here is O(n*B*C), never O(F*B*C).
    sel_p = jnp.take(y_pred, idx, axis=1)                     # (B, n, C)
    sel_t = jnp.take(y_true, idx, axis=1)
    if is_cplx:
        parts = [jnp.real(sel_p), jnp.imag(sel_p),
                 jnp.real(sel_t), jnp.imag(sel_t)]
    else:
        parts = [sel_p, sel_t]
    # Plane-major, freq-major 2-D slab: each plane slice is lane-contiguous
    # and every grid step fills all 8 sublanes.
    planes = jnp.stack([p.astype(jnp.float32) for p in parts], axis=0)
    planes = jnp.transpose(planes, (2, 0, 1, 3)).reshape(n, L)

    # Row-block size: biggest block that keeps the double-buffered input small.
    tr = min(_round_up(n, 8), 256)
    while tr > 8 and _round_up(tr, 8) * _round_up(L, 128) * 4 > (2 << 20):
        tr = _round_up(tr // 2, 8)

    tiles = pl.cdiv(_round_up(n, 8), tr)
    nc = 2 if tiles >= 2 else 1                  # use both TCs when possible
    steps_per_core = pl.cdiv(tiles, nc)
    r_pad = nc * steps_per_core * tr
    planes = jnp.pad(planes, ((0, r_pad - n), (0, 0)))   # zero rows -> 0 loss

    kernel = functools.partial(_gather_mse_kernel, bc=bc, n_planes=n_planes)
    cost = pl.CostEstimate(
        flops=int(10 * n * bc),
        transcendentals=int(2 * n * bc) if is_cplx else 0,
        bytes_accessed=int(r_pad * L * 4 + nc * 8 * 128 * 4))

    out = pl.pallas_call(
        kernel,
        out_shape=jax.ShapeDtypeStruct((nc, 8, 128), jnp.float32),
        grid=(nc, steps_per_core),
        in_specs=[pl.BlockSpec((tr, L),
                               lambda c_, s_: (c_ * steps_per_core + s_, 0))],
        out_specs=pl.BlockSpec((1, 8, 128), lambda c_, s_: (c_, 0, 0)),
        scratch_shapes=[pltpu.VMEM((tr, bc), jnp.float32)],
        compiler_params=pltpu.CompilerParams(
            dimension_semantics=("parallel", "arbitrary")),
        cost_estimate=cost,
    )(planes)
    return jnp.sum(out[:, 0, 0]) * inv_count


# ----------------------------------------------------------------------------
# Kernel 2: masked streaming path.  Reads pred / true in their NATIVE
# [B, F, P] order, tiled and pipelined over F, multiplies by a 0/1
# (multiplicity) per-frequency weight, accumulates in VMEM and finalizes at
# the last step of each core's chunk.
# ----------------------------------------------------------------------------
def _stream_mse_kernel(w_ref, yp_ref, yt_ref, o_ref, acc_ref, *,
                       c, is_cplx, f_total, tf, t_tiles, steps_per_core,
                       guard):
    core = pl.program_id(0)
    step = pl.program_id(1)

    @pl.when(step == 0)
    def _():
        acc_ref[...] = jnp.zeros_like(acc_ref)

    tile = core * steps_per_core + step          # logical F-tile index

    def _accumulate():
        xp = yp_ref[...]                          # (B, TF, P)
        xt = yt_ref[...]
        if is_cplx:                               # P = 2C, planes = [re | im]
            mag_p = jnp.sqrt(xp[..., :c] ** 2 + xp[..., c:] ** 2)
            mag_t = jnp.sqrt(xt[..., :c] ** 2 + xt[..., c:] ** 2)
        else:                                     # P = C
            mag_p = jnp.abs(xp)
            mag_t = jnp.abs(xt)
        d2 = (mag_p - mag_t) ** 2 * w_ref[...]    # (B, TF, C) * (B, TF, 1)
        if t_tiles * tf != f_total:
            # Only emitted when the last F tile is partial: out-of-range rows
            # hold stale VMEM and must not contribute (jnp.where also kills
            # any NaN/Inf in that garbage).
            f_pos = tile * tf + jax.lax.broadcasted_iota(jnp.int32, d2.shape, 1)
            d2 = jnp.where(f_pos < f_total, d2, 0.0)
        acc_ref[...] += d2

    if guard:
        # Odd tile count split across 2 cores: the clamped redundant tile is
        # re-read (index_map clamps) but must not be accumulated.
        pl.when(tile < t_tiles)(_accumulate)
    else:
        _accumulate()

    @pl.when(step == pl.num_programs(1) - 1)
    def _():
        total = jnp.sum(acc_ref[...])
        o_ref[...] = jnp.broadcast_to(total, o_ref.shape)


def _masked_mse_stream(y_pred, y_true, mask_idx, *, is_cplx, B, F, C,
                       inv_count):
    if is_cplx:
        # Single fused deinterleave pass, NATIVE [B, F, 2C] order (no swapaxes).
        xp = jnp.concatenate([jnp.real(y_pred), jnp.imag(y_pred)],
                             axis=-1).astype(jnp.float32)
        xt = jnp.concatenate([jnp.real(y_true), jnp.imag(y_true)],
                             axis=-1).astype(jnp.float32)
        P = 2 * C
    else:
        # Real inputs stream straight from HBM: zero wrapper traffic.
        xp = y_pred.astype(jnp.float32)
        xt = y_true.astype(jnp.float32)
        P = C

    # 0/1 (multiplicity) weight per frequency row, broadcast along B (tiny).
    w = jnp.zeros((F,), jnp.float32).at[mask_idx].add(1.0)
    w = jnp.broadcast_to(w[None, :, None], (B, F, 1))

    # F-tile size: full F if small, else the biggest multiple of 8 keeping the
    # double-buffered (lane-padded) block comfortably inside scoped VMEM.
    tf = min(F, 512)
    while tf > 8 and B * _round_up(tf, 8) * _round_up(P, 128) * 4 > (2 << 20):
        tf = _round_up(tf // 2, 8)
    t_tiles = pl.cdiv(F, tf)
    nc = 2 if t_tiles >= 2 else 1
    steps_per_core = pl.cdiv(t_tiles, nc)
    guard = (nc * steps_per_core) != t_tiles

    if guard:
        def f_idx(c_, s_):
            return (0, jnp.minimum(c_ * steps_per_core + s_, t_tiles - 1), 0)
    else:
        def f_idx(c_, s_):
            return (0, c_ * steps_per_core + s_, 0)

    kernel = functools.partial(_stream_mse_kernel, c=C, is_cplx=is_cplx,
                               f_total=F, tf=tf, t_tiles=t_tiles,
                               steps_per_core=steps_per_core, guard=guard)
    cost = pl.CostEstimate(
        flops=int(10 * F * B * C),
        transcendentals=int(2 * F * B * C) if is_cplx else 0,
        bytes_accessed=int(2 * F * B * P * 4 + B * F * 4 + nc * 8 * 128 * 4))

    out = pl.pallas_call(
        kernel,
        out_shape=jax.ShapeDtypeStruct((nc, 8, 128), jnp.float32),
        grid=(nc, steps_per_core),
        in_specs=[pl.BlockSpec((B, tf, 1), f_idx),
                  pl.BlockSpec((B, tf, P), f_idx),
                  pl.BlockSpec((B, tf, P), f_idx)],
        out_specs=pl.BlockSpec((1, 8, 128), lambda c_, s_: (c_, 0, 0)),
        scratch_shapes=[pltpu.VMEM((B, tf, C), jnp.float32)],
        compiler_params=pltpu.CompilerParams(
            dimension_semantics=("parallel", "arbitrary")),
        cost_estimate=cost,
    )(w, xp, xt)
    return jnp.sum(out[:, 0, 0]) * inv_count


# ----------------------------------------------------------------------------
# Dispatch: generation-aware estimated-bytes comparison.
# ----------------------------------------------------------------------------
def _stream_bias():
    """Multiplier on the stream-path byte estimate.  < 1 favours streaming
    (v7x: 3.2 TB/s HBM + 2 TCs); > 1 favours gathering (v5e: ~0.8 TB/s)."""
    try:
        kind = jax.devices()[0].device_kind.lower()
    except Exception:
        return 1.0
    if "v7" in kind:
        return 0.5
    if "v6" in kind:
        return 0.8
    if "v5 lite" in kind or "v5e" in kind or "v5litepod" in kind:
        return 1.3
    return 1.0


@functools.partial(jax.jit, static_argnames=("path",))
def masked_mse_pallas(y_pred, y_true, mask_idx, path="auto"):
    """mean((|y_pred[:, mask_idx, :]| - |y_true[:, mask_idx, :]|)**2).

    mask_idx must have a static length; re-traces once per shape / path.
    """
    B, F, C = y_pred.shape
    n = int(mask_idx.shape[0])
    is_cplx = jnp.iscomplexobj(y_pred) or jnp.iscomplexobj(y_true)
    inv_count = 1.0 / float(n * B * C)
    # Sorted indices: mean is order-invariant, sorted gather has better HBM
    # locality (and keeps repeated indices working on both paths).
    idx = jnp.sort(mask_idx.astype(jnp.int32))

    if path == "auto":
        in_bytes = 8 if is_cplx else 4
        n_planes = 4 if is_cplx else 2
        # gather: read n rows of both inputs + write & re-read the small slab.
        gather_bytes = 2 * n * B * C * in_bytes + 2 * n * n_planes * B * C * 4
        # stream: real inputs are read in place (1 pass); complex pay one
        # fused deinterleave pass (read + write) before the kernel read.
        if is_cplx:
            stream_bytes = 2 * F * B * C * (8 + 8 + 8)
        else:
            stream_bytes = 2 * F * B * C * 4
        path = ("stream" if stream_bytes * _stream_bias() < gather_bytes
                else "gather")

    if path == "stream":
        return _masked_mse_stream(y_pred, y_true, idx, is_cplx=is_cplx,
                                  B=B, F=F, C=C, inv_count=inv_count)
    return _masked_mse_gather(y_pred, y_true, idx, is_cplx=is_cplx,
                              B=B, C=C, inv_count=inv_count)


# ----------------------------------------------------------------------------
# generate_partitions + stateful module wrapper (mirrors the PyTorch module).
# ----------------------------------------------------------------------------
def generate_partitions(key, n_freq, n_samples, n_sets=1):
    # TODO(synk): uses jax.random instead of torch.randperm (statistically
    # equivalent partitions, not bit-identical to the torch module).
    parts = []
    for _ in range(n_sets):
        key, sub = jax.random.split(key)
        perm = jax.random.permutation(sub, n_freq)
        n_part = n_freq // n_samples
        parts.append(perm[: n_part * n_samples].reshape(n_part, n_samples))
    return jnp.concatenate(parts, axis=0).astype(jnp.int32), key


class MaskedMSELoss:
    """Stateful wrapper mirroring flamo's masked_mse_loss module."""

    def __init__(self, nfft, n_samples, n_sets=1, seed=0):
        self.nfft = nfft
        self.n_samples = n_samples
        self.n_sets = n_sets
        self.key = jax.random.PRNGKey(seed)
        self.mask_indices, self.key = generate_partitions(
            self.key, nfft // 2 + 1, n_samples, n_sets)
        self.i = -1

    def __call__(self, y_pred, y_true):
        self.i += 1
        if self.i >= self.mask_indices.shape[0]:
            self.mask_indices, self.key = generate_partitions(
                self.key, self.nfft // 2 + 1, self.n_samples, self.n_sets)
            self.i = -1  # (kept: same quirk as the PyTorch module)
        mask_idx = self.mask_indices[self.i]
        return masked_mse_pallas(y_pred, y_true, mask_idx)


# ----------------------------------------------------------------------------
# Demo / correctness checks (exercise both kernels, complex and real inputs,
# single-core and 2-core grids, full and partial F tiles).
# ----------------------------------------------------------------------------
if __name__ == "__main__":

    def make_inputs(B, F, C, complex_inputs, seed=0):
        k1, k2, k3, k4 = jax.random.split(jax.random.PRNGKey(seed), 4)
        if complex_inputs:
            y_pred = (jax.random.normal(k1, (B, F, C))
                      + 1j * jax.random.normal(k2, (B, F, C))
                      ).astype(jnp.complex64)
            y_true = (jax.random.normal(k3, (B, F, C))
                      + 1j * jax.random.normal(k4, (B, F, C))
                      ).astype(jnp.complex64)
        else:
            y_pred = jax.random.normal(k1, (B, F, C), jnp.float32)
            y_true = jax.random.normal(k3, (B, F, C), jnp.float32)
        return y_pred, y_true

    def check(name, y_pred, y_true, mask_idx, path):
        out = jax.block_until_ready(
            masked_mse_pallas(y_pred, y_true, mask_idx, path=path))
        ref = jax.block_until_ready(jnp.mean(
            (jnp.abs(y_pred[:, mask_idx, :])
             - jnp.abs(y_true[:, mask_idx, :])) ** 2))
        assert jnp.allclose(out, ref, rtol=1e-5, atol=1e-6), (name, out, ref)

    # 1) complex, small selected fraction: auto -> gather; also force stream.
    F1 = 256 // 2 + 1
    yp1, yt1 = make_inputs(2, F1, 4, True, seed=0)
    m1, _ = generate_partitions(jax.random.PRNGKey(1), F1, 16)
    check("gather_complex_auto", yp1, yt1, m1[0], "auto")
    check("stream_complex_forced", yp1, yt1, m1[0], "stream")

    # 2) real, small fraction (n=12, not a multiple of 8): both paths.
    yp2, yt2 = make_inputs(2, F1, 4, False, seed=2)
    m2, _ = generate_partitions(jax.random.PRNGKey(2), F1, 12)
    check("gather_real_auto", yp2, yt2, m2[0], "auto")
    check("stream_real_forced", yp2, yt2, m2[0], "stream")

    # 3) real, large F: exercises the tiled 2-core stream path with a partial
    #    last F tile and a clamped redundant tile.
    F3 = 2048 // 2 + 1
    yp3, yt3 = make_inputs(2, F3, 2, False, seed=3)
    m3 = jax.random.permutation(jax.random.PRNGKey(3), F3)[:600]
    check("stream_real_large", yp3, yt3, m3, "stream")

    # 4) complex with enough selected rows to exercise the 2-core gather path.
    F4 = 1024 // 2 + 1
    yp4, yt4 = make_inputs(2, F4, 2, True, seed=4)
    m4 = jax.random.permutation(jax.random.PRNGKey(4), F4)[:300]
    check("gather_complex_2core", yp4, yt4, m4, "gather")

    # 5) the stateful module wrapper itself (same shapes as case 1 -> jit hit).
    loss_mod = MaskedMSELoss(nfft=256, n_samples=16, n_sets=1, seed=5)
    mask_used = loss_mod.mask_indices[0]           # first call uses row 0
    out = jax.block_until_ready(loss_mod(yp1, yt1))
    ref = jnp.mean((jnp.abs(yp1[:, mask_used, :])
                    - jnp.abs(yt1[:, mask_used, :])) ** 2)
    assert jnp.allclose(out, ref, rtol=1e-5, atol=1e-6)

    print("KERNEL_OK")
</pallas_src>

<mosaic_0001>
module attributes {stable_mosaic.version = 11 : i64} {
  func.func @_gather_mse_kernel(%arg0: i32, %arg1: i32, %arg2: memref<16x32xf32, #tpu.memory_space<vmem>>, %arg3: memref<1x8x128xf32, #tpu.memory_space<vmem>>, %arg4: memref<16x8xf32, #tpu.memory_space<vmem>>) attributes {dimension_semantics = [#tpu.dimension_semantics<parallel>, #tpu.dimension_semantics<arbitrary>], iteration_bounds = array<i64: 1, 1>, scalar_prefetch = 0 : i64, scratch_operands = 1 : i64, tpu.core_type = #tpu.core_type<tc>, window_params = [{transform_indices = @transform_0, window_bounds = array<i64: 16, 32>}, {transform_indices = @transform_1, window_bounds = array<i64: 1, 8, 128>}]} {
    %c0_i32 = arith.constant 0 : i32
    %0 = arith.cmpi eq, %arg1, %c0_i32 : i32
    %1 = arith.extui %0 : i1 to i32
    %c0_i32_0 = arith.constant 0 : i32
    %2 = arith.cmpi ne, %1, %c0_i32_0 : i32
    scf.if %2 {
      %cst = arith.constant 0.000000e+00 : f32
      %24 = vector.broadcast %cst : f32 to vector<16x8xf32>
      %c0_8 = arith.constant 0 : index
      %c0_9 = arith.constant 0 : index
      %25 = vector.load %arg4[%c0_8, %c0_9] : memref<16x8xf32, #tpu.memory_space<vmem>>, vector<16x8xf32>
      tpu.vector_store %arg4[%c0_8, %c0_9], %24 {strides = array<i32>} : memref<16x8xf32, #tpu.memory_space<vmem>>, vector<16x8xf32>,
    } else {
    }
    %c0 = arith.constant 0 : index
    %c0_1 = arith.constant 0 : index
    %3 = vector.load %arg2[%c0, %c0_1] : memref<16x32xf32, #tpu.memory_space<vmem>>, vector<16x32xf32>
    %4 = vector.extract_strided_slice %3 {offsets = [0, 0], sizes = [16, 8], strides = [1, 1]} : vector<16x32xf32> to vector<16x8xf32>
    %5 = vector.extract_strided_slice %3 {offsets = [0, 8], sizes = [16, 8], strides = [1, 1]} : vector<16x32xf32> to vector<16x8xf32>
    %6 = vector.extract_strided_slice %3 {offsets = [0, 16], sizes = [16, 8], strides = [1, 1]} : vector<16x32xf32> to vector<16x8xf32>
    %7 = vector.extract_strided_slice %3 {offsets = [0, 24], sizes = [16, 8], strides = [1, 1]} : vector<16x32xf32> to vector<16x8xf32>
    %8 = arith.mulf %4, %4 : vector<16x8xf32>
    %9 = arith.mulf %5, %5 : vector<16x8xf32>
    %10 = arith.addf %8, %9 : vector<16x8xf32>
    %11 = math.sqrt %10 : vector<16x8xf32>
    %12 = arith.mulf %6, %6 : vector<16x8xf32>
    %13 = arith.mulf %7, %7 : vector<16x8xf32>
    %14 = arith.addf %12, %13 : vector<16x8xf32>
    %15 = math.sqrt %14 : vector<16x8xf32>
    %c0_2 = arith.constant 0 : index
    %c0_3 = arith.constant 0 : index
    %16 = vector.load %arg4[%c0_2, %c0_3] : memref<16x8xf32, #tpu.memory_space<vmem>>, vector<16x8xf32>
    %17 = arith.subf %11, %15 : vector<16x8xf32>
    %18 = arith.mulf %17, %17 : vector<16x8xf32>
    %19 = arith.addf %16, %18 : vector<16x8xf32>
    %c0_4 = arith.constant 0 : index
    %c0_5 = arith.constant 0 : index
    %20 = vector.load %arg4[%c0_4, %c0_5] : memref<16x8xf32, #tpu.memory_space<vmem>>, vector<16x8xf32>
    tpu.vector_store %arg4[%c0_4, %c0_5], %19 {strides = array<i32>} : memref<16x8xf32, #tpu.memory_space<vmem>>, vector<16x8xf32>,
    %c0_i32_6 = arith.constant 0 : i32
    %21 = arith.cmpi eq, %arg1, %c0_i32_6 : i32
    %22 = arith.extui %21 : i1 to i32
    %c0_i32_7 = arith.constant 0 : i32
    %23 = arith.cmpi ne, %22, %c0_i32_7 : i32
    scf.if %23 {
      %c0_8 = arith.constant 0 : index
      %c0_9 = arith.constant 0 : index
      %24 = vector.load %arg4[%c0_8, %c0_9] : memref<16x8xf32, #tpu.memory_space<vmem>>, vector<16x8xf32>
      %25 = vector.shape_cast %24 : vector<16x8xf32> to vector<1x16x8xf32>
      %cst = arith.constant dense<0.000000e+00> : vector<1xf32>
      %26 = vector.multi_reduction <add>, %25, %cst [1, 2] : vector<1x16x8xf32> to vector<1xf32>
      %27 = vector.shape_cast %26 : vector<1xf32> to vector<1x1x1xf32>
      %28 = vector.extract %27[0, 0, 0] : f32 from vector<1x1x1xf32>
      %29 = vector.broadcast %28 : f32 to vector<1x8x128xf32>
      %c0_10 = arith.constant 0 : index
      %c0_11 = arith.constant 0 : index
      %c0_12 = arith.constant 0 : index
      %30 = vector.load %arg3[%c0_10, %c0_11, %c0_12] : memref<1x8x128xf32, #tpu.memory_space<vmem>>, vector<1x8x128xf32>
      tpu.vector_store %arg3[%c0_10, %c0_11, %c0_12], %29 {strides = array<i32>} : memref<1x8x128xf32, #tpu.memory_space<vmem>>, vector<1x8x128xf32>,
    } else {
    }
    return
  }
  func.func @transform_0(%arg0: i32, %arg1: i32) -> (i32, i32) {
    %c1_i32 = arith.constant 1 : i32
    %0 = arith.muli %arg0, %c1_i32 : i32
    %1 = arith.addi %0, %arg1 : i32
    %c0_i32 = arith.constant 0 : i32
    %c0_i32_0 = arith.constant 0 : i32
    return %1, %c0_i32 : i32, i32
  }
  func.func @transform_1(%arg0: i32, %arg1: i32) -> (i32, i32, i32) {
    %c0_i32 = arith.constant 0 : i32
    %c0_i32_0 = arith.constant 0 : i32
    %c0_i32_1 = arith.constant 0 : i32
    return %arg0, %c0_i32, %c0_i32_0 : i32, i32, i32
  }
}

</mosaic_0001>

<llo_original>
// kernel: custom-call
$region0: #{custom-call}
  %s0 = inlined_call_operand.vmem [shape: c64[2,129,4], index: 0, kind: input, shape index: {}]
  %s1 = inlined_call_operand.vmem [shape: f32[2,129,4], index: 1, kind: output, shape index: {}]
  %v2 = vld [vmem:[%s0] sm:$0xff]
  %3 = vst [vmem:[%s1] sm:$0xff] %v2
  %s4 = scalar_lea.vmem %s1, 8
  %s5 = scalar_lea.vmem %s0, 8
  %v6 = vld [vmem:[%s5] sm:$0xff]
  %7 = vst [vmem:[%s4] sm:$0xff] %v6
  %s8 = scalar_lea.vmem %s1, 16
  %s9 = scalar_lea.vmem %s0, 16
  %v10 = vld [vmem:[%s9] sm:$0xff]
  %11 = vst [vmem:[%s8] sm:$0xff] %v10
  %s12 = scalar_lea.vmem %s1, 24
  %s13 = scalar_lea.vmem %s0, 24
  %v14 = vld [vmem:[%s13] sm:$0xff]
  %15 = vst [vmem:[%s12] sm:$0xff] %v14
  %s16 = scalar_lea.vmem %s1, 32
  %s17 = scalar_lea.vmem %s0, 32
  %v18 = vld [vmem:[%s17] sm:$0xff]
  %19 = vst [vmem:[%s16] sm:$0xff] %v18
  %s20 = scalar_lea.vmem %s1, 40
  %s21 = scalar_lea.vmem %s0, 40
  %v22 = vld [vmem:[%s21] sm:$0xff]
  %23 = vst [vmem:[%s20] sm:$0xff] %v22
  %s24 = scalar_lea.vmem %s1, 48
  %s25 = scalar_lea.vmem %s0, 48
  %v26 = vld [vmem:[%s25] sm:$0xff]
  %27 = vst [vmem:[%s24] sm:$0xff] %v26
  %s28 = scalar_lea.vmem %s1, 56
  %s29 = scalar_lea.vmem %s0, 56
  %v30 = vld [vmem:[%s29] sm:$0xff]
  %31 = vst [vmem:[%s28] sm:$0xff] %v30
  %s32 = scalar_lea.vmem %s1, 64
  %s33 = scalar_lea.vmem %s0, 64
  %v34 = vld [vmem:[%s33] sm:$0xff]
  %35 = vst [vmem:[%s32] sm:$0xff] %v34
  %s36 = scalar_lea.vmem %s1, 72
  %s37 = scalar_lea.vmem %s0, 72
  %v38 = vld [vmem:[%s37] sm:$0xff]
  %39 = vst [vmem:[%s36] sm:$0xff] %v38
  %s40 = scalar_lea.vmem %s1, 80
  %s41 = scalar_lea.vmem %s0, 80
  %v42 = vld [vmem:[%s41] sm:$0xff]
  %43 = vst [vmem:[%s40] sm:$0xff] %v42
  %s44 = scalar_lea.vmem %s1, 88
  %s45 = scalar_lea.vmem %s0, 88
  %v46 = vld [vmem:[%s45] sm:$0xff]
  %47 = vst [vmem:[%s44] sm:$0xff] %v46
  %s48 = scalar_lea.vmem %s1, 96
  %s49 = scalar_lea.vmem %s0, 96
  %v50 = vld [vmem:[%s49] sm:$0xff]
  %51 = vst [vmem:[%s48] sm:$0xff] %v50
  %s52 = scalar_lea.vmem %s1, 104
  %s53 = scalar_lea.vmem %s0, 104
  %v54 = vld [vmem:[%s53] sm:$0xff]
  %55 = vst [vmem:[%s52] sm:$0xff] %v54
  %s56 = scalar_lea.vmem %s1, 112
  %s57 = scalar_lea.vmem %s0, 112
  %v58 = vld [vmem:[%s57] sm:$0xff]
  %59 = vst [vmem:[%s56] sm:$0xff] %v58
  %s60 = scalar_lea.vmem %s1, 120
  %s61 = scalar_lea.vmem %s0, 120
  %v62 = vld [vmem:[%s61] sm:$0xff]
  %63 = vst [vmem:[%s60] sm:$0xff] %v62
  %s64 = scalar_lea.vmem %s1, 128
  %s65 = scalar_lea.vmem %s0, 128
  %v66 = vld [vmem:[%s65] sm:$0xff]
  %67 = vst [vmem:[%s64] sm:$0xff] %v66
  %s68 = scalar_lea.vmem %s1, 136
  %s69 = scalar_lea.vmem %s0, 136
  %v70 = vld [vmem:[%s69] sm:$0xff]
  %71 = vst [vmem:[%s68] sm:$0xff] %v70
  %s72 = scalar_lea.vmem %s1, 144
  %s73 = scalar_lea.vmem %s0, 144
  %v74 = vld [vmem:[%s73] sm:$0xff]
  %75 = vst [vmem:[%s72] sm:$0xff] %v74
  %s76 = scalar_lea.vmem %s1, 152
  %s77 = scalar_lea.vmem %s0, 152
  %v78 = vld [vmem:[%s77] sm:$0xff]
  %79 = vst [vmem:[%s76] sm:$0xff] %v78
  %s80 = scalar_lea.vmem %s1, 160
  %s81 = scalar_lea.vmem %s0, 160
  %v82 = vld [vmem:[%s81] sm:$0xff]
  %83 = vst [vmem:[%s80] sm:$0xff] %v82
  %s84 = scalar_lea.vmem %s1, 168
  %s85 = scalar_lea.vmem %s0, 168
  %v86 = vld [vmem:[%s85] sm:$0xff]
  %87 = vst [vmem:[%s84] sm:$0xff] %v86
  %s88 = scalar_lea.vmem %s1, 176
  %s89 = scalar_lea.vmem %s0, 176
  %v90 = vld [vmem:[%s89] sm:$0xff]
  %91 = vst [vmem:[%s88] sm:$0xff] %v90
  %s92 = scalar_lea.vmem %s1, 184
  %s93 = scalar_lea.vmem %s0, 184
  %v94 = vld [vmem:[%s93] sm:$0xff]
  %95 = vst [vmem:[%s92] sm:$0xff] %v94
  %s96 = scalar_lea.vmem %s1, 192
  %s97 = scalar_lea.vmem %s0, 192
  %v98 = vld [vmem:[%s97] sm:$0xff]
  %99 = vst [vmem:[%s96] sm:$0xff] %v98
  %s100 = scalar_lea.vmem %s1, 200
  %s101 = scalar_lea.vmem %s0, 200
  %v102 = vld [vmem:[%s101] sm:$0xff]
  %103 = vst [vmem:[%s100] sm:$0xff] %v102
  %s104 = scalar_lea.vmem %s1, 208
  %s105 = scalar_lea.vmem %s0, 208
  %v106 = vld [vmem:[%s105] sm:$0xff]
  %107 = vst [vmem:[%s104] sm:$0xff] %v106
  %s108 = scalar_lea.vmem %s1, 216
  %s109 = scalar_lea.vmem %s0, 216
  %v110 = vld [vmem:[%s109] sm:$0xff]
  %111 = vst [vmem:[%s108] sm:$0xff] %v110
  %s112 = scalar_lea.vmem %s1, 224
  %s113 = scalar_lea.vmem %s0, 224
  %v114 = vld [vmem:[%s113] sm:$0xff]
  %115 = vst [vmem:[%s112] sm:$0xff] %v114
  %s116 = scalar_lea.vmem %s1, 232
  %s117 = scalar_lea.vmem %s0, 232
  %v118 = vld [vmem:[%s117] sm:$0xff]
  %119 = vst [vmem:[%s116] sm:$0xff] %v118
  %s120 = scalar_lea.vmem %s1, 240
  %s121 = scalar_lea.vmem %s0, 240
  %v122 = vld [vmem:[%s121] sm:$0xff]
  %123 = vst [vmem:[%s120] sm:$0xff] %v122
  %s124 = scalar_lea.vmem %s1, 248
  %s125 = scalar_lea.vmem %s0, 248
  %v126 = vld [vmem:[%s125] sm:$0xff]
  %127 = vst [vmem:[%s124] sm:$0xff] %v126
  %s128 = scalar_lea.vmem %s0, 256
  %v129 = vld [vmem:[%s128] sm:$0x3]
  %s130 = scalar_lea.vmem %s1, 256
  %vm131 = vcmask 1041408
  %132 = vst.msk [vmem:[%s130] sm:$0xff] %vm131, %v129

// kernel: custom-call.1
$region0: #{custom-call.1}
  %s0 = inlined_call_operand.vmem [shape: c64[2,129,4], index: 0, kind: input, shape index: {}]
  %s1 = inlined_call_operand.vmem [shape: f32[2,129,4], index: 1, kind: output, shape index: {}]
  %s2 = scalar_lea.vmem %s0, 258
  %v3 = vld [vmem:[%s2] sm:$0xff]
  %4 = vst [vmem:[%s1] sm:$0xff] %v3
  %s5 = scalar_lea.vmem %s1, 8
  %s6 = scalar_lea.vmem %s2, 8
  %v7 = vld [vmem:[%s6] sm:$0xff]
  %8 = vst [vmem:[%s5] sm:$0xff] %v7
  %s9 = scalar_lea.vmem %s1, 16
  %s10 = scalar_lea.vmem %s2, 16
  %v11 = vld [vmem:[%s10] sm:$0xff]
  %12 = vst [vmem:[%s9] sm:$0xff] %v11
  %s13 = scalar_lea.vmem %s1, 24
  %s14 = scalar_lea.vmem %s2, 24
  %v15 = vld [vmem:[%s14] sm:$0xff]
  %16 = vst [vmem:[%s13] sm:$0xff] %v15
  %s17 = scalar_lea.vmem %s1, 32
  %s18 = scalar_lea.vmem %s2, 32
  %v19 = vld [vmem:[%s18] sm:$0xff]
  %20 = vst [vmem:[%s17] sm:$0xff] %v19
  %s21 = scalar_lea.vmem %s1, 40
  %s22 = scalar_lea.vmem %s2, 40
  %v23 = vld [vmem:[%s22] sm:$0xff]
  %24 = vst [vmem:[%s21] sm:$0xff] %v23
  %s25 = scalar_lea.vmem %s1, 48
  %s26 = scalar_lea.vmem %s2, 48
  %v27 = vld [vmem:[%s26] sm:$0xff]
  %28 = vst [vmem:[%s25] sm:$0xff] %v27
  %s29 = scalar_lea.vmem %s1, 56
  %s30 = scalar_lea.vmem %s2, 56
  %v31 = vld [vmem:[%s30] sm:$0xff]
  %32 = vst [vmem:[%s29] sm:$0xff] %v31
  %s33 = scalar_lea.vmem %s1, 64
  %s34 = scalar_lea.vmem %s2, 64
  %v35 = vld [vmem:[%s34] sm:$0xff]
  %36 = vst [vmem:[%s33] sm:$0xff] %v35
  %s37 = scalar_lea.vmem %s1, 72
  %s38 = scalar_lea.vmem %s2, 72
  %v39 = vld [vmem:[%s38] sm:$0xff]
  %40 = vst [vmem:[%s37] sm:$0xff] %v39
  %s41 = scalar_lea.vmem %s1, 80
  %s42 = scalar_lea.vmem %s2, 80
  %v43 = vld [vmem:[%s42] sm:$0xff]
  %44 = vst [vmem:[%s41] sm:$0xff] %v43
  %s45 = scalar_lea.vmem %s1, 88
  %s46 = scalar_lea.vmem %s2, 88
  %v47 = vld [vmem:[%s46] sm:$0xff]
  %48 = vst [vmem:[%s45] sm:$0xff] %v47
  %s49 = scalar_lea.vmem %s1, 96
  %s50 = scalar_lea.vmem %s2, 96
  %v51 = vld [vmem:[%s50] sm:$0xff]
  %52 = vst [vmem:[%s49] sm:$0xff] %v51
  %s53 = scalar_lea.vmem %s1, 104
  %s54 = scalar_lea.vmem %s2, 104
  %v55 = vld [vmem:[%s54] sm:$0xff]
  %56 = vst [vmem:[%s53] sm:$0xff] %v55
  %s57 = scalar_lea.vmem %s1, 112
  %s58 = scalar_lea.vmem %s2, 112
  %v59 = vld [vmem:[%s58] sm:$0xff]
  %60 = vst [vmem:[%s57] sm:$0xff] %v59
  %s61 = scalar_lea.vmem %s1, 120
  %s62 = scalar_lea.vmem %s2, 120
  %v63 = vld [vmem:[%s62] sm:$0xff]
  %64 = vst [vmem:[%s61] sm:$0xff] %v63
  %s65 = scalar_lea.vmem %s1, 128
  %s66 = scalar_lea.vmem %s2, 128
  %v67 = vld [vmem:[%s66] sm:$0xff]
  %68 = vst [vmem:[%s65] sm:$0xff] %v67
  %s69 = scalar_lea.vmem %s1, 136
  %s70 = scalar_lea.vmem %s2, 136
  %v71 = vld [vmem:[%s70] sm:$0xff]
  %72 = vst [vmem:[%s69] sm:$0xff] %v71
  %s73 = scalar_lea.vmem %s1, 144
  %s74 = scalar_lea.vmem %s2, 144
  %v75 = vld [vmem:[%s74] sm:$0xff]
  %76 = vst [vmem:[%s73] sm:$0xff] %v75
  %s77 = scalar_lea.vmem %s1, 152
  %s78 = scalar_lea.vmem %s2, 152
  %v79 = vld [vmem:[%s78] sm:$0xff]
  %80 = vst [vmem:[%s77] sm:$0xff] %v79
  %s81 = scalar_lea.vmem %s1, 160
  %s82 = scalar_lea.vmem %s2, 160
  %v83 = vld [vmem:[%s82] sm:$0xff]
  %84 = vst [vmem:[%s81] sm:$0xff] %v83
  %s85 = scalar_lea.vmem %s1, 168
  %s86 = scalar_lea.vmem %s2, 168
  %v87 = vld [vmem:[%s86] sm:$0xff]
  %88 = vst [vmem:[%s85] sm:$0xff] %v87
  %s89 = scalar_lea.vmem %s1, 176
  %s90 = scalar_lea.vmem %s2, 176
  %v91 = vld [vmem:[%s90] sm:$0xff]
  %92 = vst [vmem:[%s89] sm:$0xff] %v91
  %s93 = scalar_lea.vmem %s1, 184
  %s94 = scalar_lea.vmem %s2, 184
  %v95 = vld [vmem:[%s94] sm:$0xff]
  %96 = vst [vmem:[%s93] sm:$0xff] %v95
  %s97 = scalar_lea.vmem %s1, 192
  %s98 = scalar_lea.vmem %s2, 192
  %v99 = vld [vmem:[%s98] sm:$0xff]
  %100 = vst [vmem:[%s97] sm:$0xff] %v99
  %s101 = scalar_lea.vmem %s1, 200
  %s102 = scalar_lea.vmem %s2, 200
  %v103 = vld [vmem:[%s102] sm:$0xff]
  %104 = vst [vmem:[%s101] sm:$0xff] %v103
  %s105 = scalar_lea.vmem %s1, 208
  %s106 = scalar_lea.vmem %s2, 208
  %v107 = vld [vmem:[%s106] sm:$0xff]
  %108 = vst [vmem:[%s105] sm:$0xff] %v107
  %s109 = scalar_lea.vmem %s1, 216
  %s110 = scalar_lea.vmem %s2, 216
  %v111 = vld [vmem:[%s110] sm:$0xff]
  %112 = vst [vmem:[%s109] sm:$0xff] %v111
  %s113 = scalar_lea.vmem %s1, 224
  %s114 = scalar_lea.vmem %s2, 224
  %v115 = vld [vmem:[%s114] sm:$0xff]
  %116 = vst [vmem:[%s113] sm:$0xff] %v115
  %s117 = scalar_lea.vmem %s1, 232
  %s118 = scalar_lea.vmem %s2, 232
  %v119 = vld [vmem:[%s118] sm:$0xff]
  %120 = vst [vmem:[%s117] sm:$0xff] %v119
  %s121 = scalar_lea.vmem %s1, 240
  %s122 = scalar_lea.vmem %s2, 240
  %v123 = vld [vmem:[%s122] sm:$0xff]
  %124 = vst [vmem:[%s121] sm:$0xff] %v123
  %s125 = scalar_lea.vmem %s1, 248
  %s126 = scalar_lea.vmem %s2, 248
  %v127 = vld [vmem:[%s126] sm:$0xff]
  %128 = vst [vmem:[%s125] sm:$0xff] %v127
  %s129 = scalar_lea.vmem %s2, 256
  %v130 = vld [vmem:[%s129] sm:$0x3]
  %s131 = scalar_lea.vmem %s1, 256
  %vm132 = vcmask 1041408
  %133 = vst.msk [vmem:[%s131] sm:$0xff] %vm132, %v130

// kernel: masked_mse_pallas.1
$region0: #{masked_mse_pallas.1}
  #allocation0 [shape = 'u32[]', space=smem, size = 0x4, offset = 0x4, fixed_abs, tag = 'smem constant byte address 0x4 - core index']
  #allocation1 [shape = 'u32[144,128]{1,0:T(1,128)}', space=vmem, size = 0x12000, scoped, tag = 'internal scratch']
  #allocation2 [shape = 'f32[16,8]{1,0:T(8,128)}', space=vmem, size = 0x2000, scoped, tag = 'scratch operand']
  %s0 = inlined_call_operand.vmem [shape: f32[16,32], index: 0, kind: input, shape index: {}]
  %s1 = inlined_call_operand.vmem [shape: f32[1,8,128], index: 1, kind: output, shape index: {}]
  %s2 = sld [smem:[#allocation0]]
  $region22: #{masked_mse_pallas.1} parent=0
    _
  %s4 = ssub.s32 1, %s2
  %s5 = scalar_select 0, %s4, %s2
  // Predicated region
  $region2: #{masked_mse_pallas.1} parent=0 // pred_check
    _
  $region3: #{masked_mse_pallas.1} parent=0 // pred_check_branch
    %7 = sbr.rel (0) target = $region5
  $region4: #{masked_mse_pallas.1} parent=0 // pred_region
    %s8 = sadd.s32 0, 0
    %s9 = smul.u32 2, %s8
    %p10 = scmp.lt.s32.totalorder %s9, 1
    %s11 = scalar_select %p10, %s9, 1
    %s12 = smul.addr %s11, 8
    %s13 = scalar_lea.vmem %s0, %s12
    %s14 = sadd.s32 0, 0
    %s15 = smul.u32 2, %s14
  $region5: #{masked_mse_pallas.1} parent=0 // pred_fallthru
    _
  %s16 = sadd.s32 0, 0
  %s17 = smul.u32 2, %s16
  %p18 = scmp.lt.s32.totalorder %s17, 1
  %s19 = scalar_select %p18, %s17, 1
  %s20 = smul.addr %s19, 8
  %s21 = scalar_lea.vmem %s0, %s20
  %s22 = sadd.s32 0, 0
  %s23 = smul.u32 2, %s22
  %p24 = scmp.lt.s32.totalorder %s23, 1
  %s25 = scalar_select %p24, %s23, 1
  %s26 = smul.addr %s25, 8
  %s27 = scalar_lea.vmem %s0, %s26
  %s28 = sadd.s32 0, 0
  %s29 = smul.u32 2, %s28
  %p30 = scmp.eq.s32.totalorder 0, 0
  // Predicated region
  $region6: #{masked_mse_pallas.1} parent=0 // pred_check
    %p31 = pneg %p30
  $region7: #{masked_mse_pallas.1} parent=0 // pred_check_branch
    %33 = sbr.rel (%p31) target = $region9
  $region8: #{masked_mse_pallas.1} parent=0 // pred_region
    %vm34 = vcmask 64512
    %35 = vst.msk [vmem:[#allocation2] sm:$0xff] %vm34, 0.0
    %36 = vst.msk [vmem:[#allocation2 + $0x8] sm:$0xff] %vm34, 0.0
  $region9: #{masked_mse_pallas.1} parent=0 // pred_fallthru
    _
  %v37 = vld [vmem:[%s27] sm:$0xff]
  %v38 = vld [vmem:[%s27 + $0x8] sm:$0xff]
  %v39 = vmul.f32 %v37, %v37
  %v40 = vmul.f32 %v38, %v38
  %43 = vrot.lane.b32.xlu0 %v39, 120
  %v44 = vpop.permute.xlu0 %43
  %45 = vrot.lane.b32.xlu0 %v40, 120
  %v46 = vpop.permute.xlu0 %45
  %v49 = vadd.f32 %v39, %v44
  %v50 = vadd.f32 %v40, %v46
  %v51 = vrsqrt.pop %v49
  %v52 = vmul.f32 %v49, %v51
  %vm53 = vcmp.eq.f32.partialorder %v49, inf
  %v54 = vsel %vm53, %v49, %v52
  %vm55 = vcmp.eq.f32.partialorder %v49, 0.0
  %v56 = vand.u32 %v49, 2147483648
  %v57 = vsel %vm55, %v56, %v54
  %v58 = vrsqrt.pop %v50
  %v59 = vmul.f32 %v50, %v58
  %vm60 = vcmp.eq.f32.partialorder %v50, inf
  %v61 = vsel %vm60, %v50, %v59
  %vm62 = vcmp.eq.f32.partialorder %v50, 0.0
  %v63 = vand.u32 %v50, 2147483648
  %v64 = vsel %vm62, %v63, %v61
  %v65 = vld [vmem:[#allocation2] sm:$0xff]
  %v66 = vld [vmem:[#allocation2 + $0x8] sm:$0xff]
  %69 = vrot.lane.b32.xlu0 %v57, 112
  %v70 = vpop.permute.xlu0 %69
  %71 = vrot.lane.b32.xlu0 %v64, 112
  %v72 = vpop.permute.xlu0 %71
  %v75 = vsub.f32 %v57, %v70
  %v76 = vsub.f32 %v64, %v72
  %v77 = vmul.f32 %v75, %v75
  %v78 = vmul.f32 %v76, %v76
  %v79 = vadd.f32 %v65, %v77
  %v80 = vadd.f32 %v66, %v78
  %vm81 = vcmask 64512
  %82 = vst.msk [vmem:[#allocation2] sm:$0xff] %vm81, %v79
  %83 = vst.msk [vmem:[#allocation2 + $0x8] sm:$0xff] %vm81, %v80
  // Predicated region
  $region10: #{masked_mse_pallas.1} parent=0 // pred_check
    %p84 = pneg %p30
  $region11: #{masked_mse_pallas.1} parent=0 // pred_check_branch
    %86 = sbr.rel (%p84) target = $region13
  $region12: #{masked_mse_pallas.1} parent=0 // pred_region
    %v87 = vld [vmem:[#allocation2] sm:$0xff]
    %v88 = vld [vmem:[#allocation2 + $0x8] sm:$0xff]
    %v89 = vsel %vm81, %v87, 0.0
    %v90 = vsel %vm81, %v88, 0.0
    %v91 = vadd.f32 %v89, %v90
    %92 = vadd.xlane.f32.xlu0 %v91
    %v93 = vpop.xlane.xlu0 %92
    %v94 = vrot.slane %v93, 4
    %v95 = vadd.f32 %v93, %v94
    %v96 = vrot.slane %v95, 2
    %v97 = vadd.f32 %v95, %v96
    %v98 = vrot.slane %v97, 1
    %v99 = vadd.f32 %v97, %v98
    %s100 = vtos %v99
    %v101 = vstv %s100
    %102 = vst [vmem:[%s1] sm:$0xff] %v101
  $region13: #{masked_mse_pallas.1} parent=0 // pred_fallthru
    _
  // Predicated region
  $region14: #{masked_mse_pallas.1} parent=0 // pred_check
    _
  $region15: #{masked_mse_pallas.1} parent=0 // pred_check_branch
    %104 = sbr.rel (0) target = $region17
  $region16: #{masked_mse_pallas.1} parent=0 // pred_region
    _
  $region17: #{masked_mse_pallas.1} parent=0 // pred_fallthru
    _
  // Predicated region
  $region18: #{masked_mse_pallas.1} parent=0 // pred_check
    _
  $region19: #{masked_mse_pallas.1} parent=0 // pred_check_branch
    %106 = sbr.rel (0) target = $region21
  $region20: #{masked_mse_pallas.1} parent=0 // pred_region
    _
  $region21: #{masked_mse_pallas.1} parent=0 // pred_fallthru
    _

</llo_original>
